<compile_context>
chip_gen: v5e
topology: v5e:2x2
jax: 0.10.0
libtpu: 0.0.40
codegen_flags: <defaults>
</compile_context>

<pallas_src>
import functools

import jax
import jax.numpy as jnp
from jax import lax
from jax.experimental import pallas as pl
from jax.experimental.pallas import tpu as pltpu


def _fused_kernel(z_ref, rand_ref, lam_ref, loss_ref, acc_ref, *, tau, reg, n_way):
    inv_n = jnp.float32(1.0 / n_way)

    # ---- 1. L2 row-normalization (rsqrt -> EUP slot, no VPU divide) ------
    z = z_ref[...].astype(jnp.float32)
    sq = jnp.sum(z * z, axis=-1, keepdims=True)
    zn = z * lax.rsqrt(jnp.maximum(sq, 1e-24))   # F.normalize(z, p=2, dim=1)

    s = zn[:n_way, :]   # support rows (view 1)
    q = zn[n_way:, :]   # query rows   (view 2)

    # ---- 2. G = S S^T + reg*I and K = Q S^T (MXU, contract over d for both
    #         operands -> A @ B^T form, no XLU transpose of S) -------------
    dn = (((1,), (1,)), ((), ()))
    row = lax.broadcasted_iota(jnp.int32, (n_way, 1), 0)
    col = lax.broadcasted_iota(jnp.int32, (1, n_way), 1)
    eye = (row == col).astype(jnp.float32)

    g = lax.dot_general(s, s, dn, preferred_element_type=jnp.float32) + jnp.float32(reg) * eye
    k = lax.dot_general(q, s, dn, preferred_element_type=jnp.float32)

    # ---- 3. In-kernel SPD inverse: Gauss-Jordan on [G | I] ---------------
    # No pivoting needed: rows of S are unit-norm, so G is diagonally
    # dominant (diag = 1 + reg, |off-diag| <= 1) and extremely well
    # conditioned for reg = 50.
    def gj_step(idx, carry):
        a, inv = carry
        in_row = row == idx                      # (n_way, 1)
        in_col = col == idx                      # (1, n_way)
        # row `idx` of a / inv (sublane reduce -> XLU slot)
        a_row = jnp.sum(jnp.where(in_row, a, 0.0), axis=0, keepdims=True)      # (1, n)
        i_row = jnp.sum(jnp.where(in_row, inv, 0.0), axis=0, keepdims=True)    # (1, n)
        pivot = jnp.sum(jnp.where(in_col, a_row, 0.0), axis=1, keepdims=True)  # (1, 1)
        ipiv = 1.0 / pivot                       # exact (accuracy of the solve)
        a_row = a_row * ipiv
        i_row = i_row * ipiv
        # column `idx` of a -> elimination factors for every row
        fac = jnp.sum(jnp.where(in_col, a, 0.0), axis=1, keepdims=True)        # (n, 1)
        a_new = jnp.where(in_row, jnp.broadcast_to(a_row, a.shape), a - fac * a_row)
        i_new = jnp.where(in_row, jnp.broadcast_to(i_row, inv.shape), inv - fac * i_row)
        return a_new, i_new

    _, g_inv = lax.fori_loop(0, n_way, gj_step, (g, eye), unroll=(n_way <= 8))

    # ---- 4. logits = tau * K G^{-1} (MXU) --------------------------------
    logits = jnp.dot(k, g_inv, preferred_element_type=jnp.float32) * jnp.float32(tau)

    # ---- 5. mixup cross-entropy + first-index argmax accuracy ------------
    rb = rand_ref[...]                                            # (n_way, 1) labels_b
    row_max = jnp.max(logits, axis=-1, keepdims=True)
    lse = jnp.log(jnp.sum(jnp.exp(logits - row_max), axis=-1, keepdims=True)) + row_max

    # gather logits[i, label_i] via iota masks (diagonal / rand_index).
    pick_a = jnp.sum(jnp.where(col == row, logits, 0.0), axis=-1, keepdims=True)
    pick_b = jnp.sum(jnp.where(col == rb, logits, 0.0), axis=-1, keepdims=True)

    lam = lam_ref[0]                                              # SMEM scalar
    ce = lam * (lse - pick_a) + (1.0 - lam) * (lse - pick_b)      # (n_way, 1)

    # first-index argmax per row (torch.argmax tie-break), reusing row_max.
    is_max = logits == row_max
    argm = jnp.min(jnp.where(is_max, col, n_way), axis=-1, keepdims=True)     # (n_way, 1)
    hit = (lam * (argm == row).astype(jnp.float32)
           + (1.0 - lam) * (argm == rb).astype(jnp.float32))

    # scalar SMEM outputs (no lane-sparse VMEM tile / padded writeback).
    loss_ref[0] = jnp.sum(ce) * inv_n
    acc_ref[0] = jnp.sum(hit) * inv_n


def ntxent_r2d2_forward(z, rand_index, lam, *, tau=1.0, reg=50.0,
                        n_supp=1, n_query=1, multiplier=2):
    """Matches NTXent_R2D2_qcm(tau, reg, multiplier=2).forward(z, rand_index, lam)
    for the non-distributed path with the default n_supp=1 / n_query=1.
    `z` may be float32 or bfloat16; it is DMA'd in its native dtype."""
    n, d = z.shape
    assert multiplier == 2 and n_supp == 1 and n_query == 1, \
        "kernel specialized for the module defaults (multiplier=2, 1 support / 1 query view)"
    assert n % multiplier == 0
    n_way = n // multiplier

    rand2d = jnp.asarray(rand_index, jnp.int32).reshape(n_way, 1)   # labels_b
    lam1 = jnp.asarray(lam, jnp.float32).reshape(1)                 # mixup coefficient

    loss, acc = pl.pallas_call(
        functools.partial(_fused_kernel, tau=float(tau), reg=float(reg), n_way=n_way),
        grid=(1,),
        in_specs=[
            pl.BlockSpec((n, d), lambda i: (0, 0)),                  # z (native dtype)
            pl.BlockSpec((n_way, 1), lambda i: (0, 0)),              # rand_index
            pl.BlockSpec(memory_space=pltpu.MemorySpace.SMEM),       # lam scalar
        ],
        out_specs=(
            pl.BlockSpec(memory_space=pltpu.MemorySpace.SMEM),       # loss scalar
            pl.BlockSpec(memory_space=pltpu.MemorySpace.SMEM),       # acc scalar
        ),
        out_shape=(
            jax.ShapeDtypeStruct((1,), jnp.float32),
            jax.ShapeDtypeStruct((1,), jnp.float32),
        ),
        compiler_params=pltpu.CompilerParams(
            dimension_semantics=("arbitrary",),
            vmem_limit_bytes=32 * 1024 * 1024,   # tiny working set; safe on v5e/v6e/v7x
        ),
    )(z, rand2d, lam1)

    return loss[0], acc[0]


def _reference(z, rand_index, lam, tau=1.0, reg=50.0):
    """Pure-JAX mirror of the PyTorch forward (non-distributed, n_supp=n_query=1)."""
    n = z.shape[0]
    n_way = n // 2
    zf = z.astype(jnp.float32)
    zn = zf / jnp.maximum(jnp.linalg.norm(zf, axis=1, keepdims=True), 1e-12)
    s, q = zn[:n_way], zn[n_way:]
    g = s @ s.T + reg * jnp.eye(n_way, dtype=jnp.float32)
    ridge = jnp.linalg.inv(g)
    w = s.T @ ridge                      # one_hot(arange(n_way)) is the identity for n_supp=1
    logits = tau * (q @ w)               # (n_way, n_way)
    labels_a = jnp.arange(n_way)
    labels_b = labels_a[rand_index]
    logp = jax.nn.log_softmax(logits, axis=-1)
    ce_a = -jnp.mean(logp[jnp.arange(n_way), labels_a])
    ce_b = -jnp.mean(logp[jnp.arange(n_way), labels_b])
    loss = lam * ce_a + (1.0 - lam) * ce_b
    pred = jnp.argmax(logits, axis=1)
    acc = (lam * jnp.sum(pred == labels_a) + (1.0 - lam) * jnp.sum(pred == labels_b)) / n_way
    return loss, acc


if __name__ == "__main__":
    # z is (batch, hidden) with batch = multiplier * n_way; rand_index permutes
    # the n_way query labels; lam is the scalar mixup coefficient.
    N, D = 8, 32
    n_way = N // 2
    key = jax.random.PRNGKey(0)
    kz, kp, kl = jax.random.split(key, 3)
    z = jax.random.normal(kz, (N, D), dtype=jnp.float32)
    rand_index = jax.random.permutation(kp, n_way).astype(jnp.int32)
    lam = jax.random.uniform(kl, (), dtype=jnp.float32)

    loss, acc = ntxent_r2d2_forward(z, rand_index, lam, tau=1.0, reg=50.0)
    loss = jax.block_until_ready(loss)
    acc = jax.block_until_ready(acc)

    ref_loss, ref_acc = _reference(z, rand_index, lam, tau=1.0, reg=50.0)
    assert jnp.allclose(loss, ref_loss, atol=1e-4, rtol=1e-4), (loss, ref_loss)
    assert jnp.allclose(acc, ref_acc, atol=1e-5), (acc, ref_acc)

    print("KERNEL_OK")
</pallas_src>

<mosaic_0001>
module attributes {stable_mosaic.version = 11 : i64} {
  func.func @_fused_kernel(%arg0: i32, %arg1: memref<8x32xf32, #tpu.memory_space<vmem>>, %arg2: memref<4x1xi32, #tpu.memory_space<vmem>>, %arg3: memref<1xf32, #tpu.memory_space<smem>>, %arg4: memref<1xf32, #tpu.memory_space<smem>>, %arg5: memref<1xf32, #tpu.memory_space<smem>>) attributes {dimension_semantics = [#tpu.dimension_semantics<arbitrary>], iteration_bounds = array<i64: 1>, scalar_prefetch = 0 : i64, scratch_operands = 0 : i64, tpu.core_type = #tpu.core_type<tc>, window_params = [{pipeline_mode = #tpu.pipeline_mode<synchronous>, transform_indices = @transform_0, window_bounds = array<i64: 8, 32>}, {pipeline_mode = #tpu.pipeline_mode<synchronous>, transform_indices = @transform_1, window_bounds = array<i64: 4, 1>}, {transform_indices = @transform_2, window_bounds = array<i64: 1>}, {transform_indices = @transform_3, window_bounds = array<i64: 1>}, {transform_indices = @transform_4, window_bounds = array<i64: 1>}]} {
    %c0 = arith.constant 0 : index
    %c0_0 = arith.constant 0 : index
    %0 = vector.load %arg1[%c0, %c0_0] : memref<8x32xf32, #tpu.memory_space<vmem>>, vector<8x32xf32>
    %1 = arith.mulf %0, %0 : vector<8x32xf32>
    %cst = arith.constant dense<0.000000e+00> : vector<8xf32>
    %2 = vector.multi_reduction <add>, %1, %cst [1] : vector<8x32xf32> to vector<8xf32>
    %3 = vector.shape_cast %2 : vector<8xf32> to vector<8x1xf32>
    %cst_1 = arith.constant 1.000000e-24 : f32
    %4 = vector.broadcast %cst_1 : f32 to vector<8x1xf32>
    %5 = arith.maximumf %3, %4 : vector<8x1xf32>
    %6 = math.rsqrt %5 : vector<8x1xf32>
    %7 = vector.broadcast %6 : vector<8x1xf32> to vector<8x32xf32>
    %8 = arith.mulf %0, %7 : vector<8x32xf32>
    %9 = vector.extract_strided_slice %8 {offsets = [0, 0], sizes = [4, 32], strides = [1, 1]} : vector<8x32xf32> to vector<4x32xf32>
    %10 = vector.extract_strided_slice %8 {offsets = [4, 0], sizes = [4, 32], strides = [1, 1]} : vector<8x32xf32> to vector<4x32xf32>
    %11 = tpu.iota {dimensions = array<i32: 0>} : vector<4x1xi32>
    %12 = tpu.iota {dimensions = array<i32: 1>} : vector<1x4xi32>
    %13 = vector.broadcast %11 : vector<4x1xi32> to vector<4x4xi32>
    %14 = vector.broadcast %12 : vector<1x4xi32> to vector<4x4xi32>
    %15 = arith.cmpi eq, %13, %14 : vector<4x4xi32>
    %16 = arith.extui %15 : vector<4x4xi1> to vector<4x4xi32>
    %17 = arith.sitofp %16 : vector<4x4xi32> to vector<4x4xf32>
    %cst_2 = arith.constant dense<0.000000e+00> : vector<4x4xf32>
    %18 = tpu.matmul %9, %9, %cst_2 {dimension_numbers = #tpu.dot_dimension_numbers<[1], [1], [0], [0], [0, 0, 1, 0], [], []>} : vector<4x32xf32>, vector<4x32xf32>, vector<4x4xf32> -> vector<4x4xf32>
    %cst_3 = arith.constant 5.000000e+01 : f32
    %19 = vector.broadcast %cst_3 : f32 to vector<4x4xf32>
    %20 = arith.mulf %19, %17 : vector<4x4xf32>
    %21 = arith.addf %18, %20 : vector<4x4xf32>
    %cst_4 = arith.constant dense<0.000000e+00> : vector<4x4xf32>
    %22 = tpu.matmul %10, %9, %cst_4 {dimension_numbers = #tpu.dot_dimension_numbers<[1], [1], [0], [0], [0, 0, 1, 0], [], []>} : vector<4x32xf32>, vector<4x32xf32>, vector<4x4xf32> -> vector<4x4xf32>
    %c0_i32 = arith.constant 0 : i32
    %23 = vector.broadcast %c0_i32 : i32 to vector<4x1xi32>
    %24 = arith.cmpi eq, %11, %23 : vector<4x1xi32>
    %25 = vector.broadcast %c0_i32 : i32 to vector<1x4xi32>
    %26 = arith.cmpi eq, %12, %25 : vector<1x4xi32>
    %cst_5 = arith.constant 0.000000e+00 : f32
    %27 = vector.shape_cast %24 : vector<4x1xi1> to vector<4x1xi1>
    %28 = vector.broadcast %27 : vector<4x1xi1> to vector<4x4xi1>
    %29 = vector.broadcast %cst_5 : f32 to vector<4x4xf32>
    %30 = arith.select %28, %21, %29 : vector<4x4xi1>, vector<4x4xf32>
    %cst_6 = arith.constant dense<0.000000e+00> : vector<4xf32>
    %31 = vector.multi_reduction <add>, %30, %cst_6 [0] : vector<4x4xf32> to vector<4xf32>
    %32 = vector.shape_cast %31 : vector<4xf32> to vector<1x4xf32>
    %cst_7 = arith.constant 0.000000e+00 : f32
    %33 = vector.shape_cast %24 : vector<4x1xi1> to vector<4x1xi1>
    %34 = vector.broadcast %33 : vector<4x1xi1> to vector<4x4xi1>
    %35 = vector.broadcast %cst_7 : f32 to vector<4x4xf32>
    %36 = arith.select %34, %17, %35 : vector<4x4xi1>, vector<4x4xf32>
    %cst_8 = arith.constant dense<0.000000e+00> : vector<4xf32>
    %37 = vector.multi_reduction <add>, %36, %cst_8 [0] : vector<4x4xf32> to vector<4xf32>
    %38 = vector.shape_cast %37 : vector<4xf32> to vector<1x4xf32>
    %cst_9 = arith.constant 0.000000e+00 : f32
    %39 = vector.broadcast %cst_9 : f32 to vector<1x4xf32>
    %40 = arith.select %26, %32, %39 : vector<1x4xi1>, vector<1x4xf32>
    %cst_10 = arith.constant dense<0.000000e+00> : vector<1xf32>
    %41 = vector.multi_reduction <add>, %40, %cst_10 [1] : vector<1x4xf32> to vector<1xf32>
    %42 = vector.shape_cast %41 : vector<1xf32> to vector<1x1xf32>
    %cst_11 = arith.constant 1.000000e+00 : f32
    %43 = vector.broadcast %cst_11 : f32 to vector<1x1xf32>
    %44 = arith.divf %43, %42 : vector<1x1xf32>
    %45 = vector.broadcast %44 : vector<1x1xf32> to vector<1x4xf32>
    %46 = arith.mulf %32, %45 : vector<1x4xf32>
    %47 = vector.broadcast %44 : vector<1x1xf32> to vector<1x4xf32>
    %48 = arith.mulf %38, %47 : vector<1x4xf32>
    %cst_12 = arith.constant 0.000000e+00 : f32
    %49 = vector.shape_cast %26 : vector<1x4xi1> to vector<1x4xi1>
    %50 = vector.broadcast %49 : vector<1x4xi1> to vector<4x4xi1>
    %51 = vector.broadcast %cst_12 : f32 to vector<4x4xf32>
    %52 = arith.select %50, %21, %51 : vector<4x4xi1>, vector<4x4xf32>
    %cst_13 = arith.constant dense<0.000000e+00> : vector<4xf32>
    %53 = vector.multi_reduction <add>, %52, %cst_13 [1] : vector<4x4xf32> to vector<4xf32>
    %54 = vector.shape_cast %53 : vector<4xf32> to vector<4x1xf32>
    %55 = vector.shape_cast %46 : vector<1x4xf32> to vector<1x4xf32>
    %56 = vector.broadcast %55 : vector<1x4xf32> to vector<4x4xf32>
    %57 = vector.broadcast %54 : vector<4x1xf32> to vector<4x4xf32>
    %58 = vector.broadcast %46 : vector<1x4xf32> to vector<4x4xf32>
    %59 = arith.mulf %57, %58 : vector<4x4xf32>
    %60 = arith.subf %21, %59 : vector<4x4xf32>
    %61 = vector.shape_cast %24 : vector<4x1xi1> to vector<4x1xi1>
    %62 = vector.broadcast %61 : vector<4x1xi1> to vector<4x4xi1>
    %63 = arith.select %62, %56, %60 : vector<4x4xi1>, vector<4x4xf32>
    %64 = vector.shape_cast %48 : vector<1x4xf32> to vector<1x4xf32>
    %65 = vector.broadcast %64 : vector<1x4xf32> to vector<4x4xf32>
    %66 = vector.broadcast %54 : vector<4x1xf32> to vector<4x4xf32>
    %67 = vector.broadcast %48 : vector<1x4xf32> to vector<4x4xf32>
    %68 = arith.mulf %66, %67 : vector<4x4xf32>
    %69 = arith.subf %17, %68 : vector<4x4xf32>
    %70 = vector.shape_cast %24 : vector<4x1xi1> to vector<4x1xi1>
    %71 = vector.broadcast %70 : vector<4x1xi1> to vector<4x4xi1>
    %72 = arith.select %71, %65, %69 : vector<4x4xi1>, vector<4x4xf32>
    %c1_i32 = arith.constant 1 : i32
    %73 = vector.broadcast %c1_i32 : i32 to vector<4x1xi32>
    %74 = arith.cmpi eq, %11, %73 : vector<4x1xi32>
    %75 = vector.broadcast %c1_i32 : i32 to vector<1x4xi32>
    %76 = arith.cmpi eq, %12, %75 : vector<1x4xi32>
    %cst_14 = arith.constant 0.000000e+00 : f32
    %77 = vector.shape_cast %74 : vector<4x1xi1> to vector<4x1xi1>
    %78 = vector.broadcast %77 : vector<4x1xi1> to vector<4x4xi1>
    %79 = vector.broadcast %cst_14 : f32 to vector<4x4xf32>
    %80 = arith.select %78, %63, %79 : vector<4x4xi1>, vector<4x4xf32>
    %cst_15 = arith.constant dense<0.000000e+00> : vector<4xf32>
    %81 = vector.multi_reduction <add>, %80, %cst_15 [0] : vector<4x4xf32> to vector<4xf32>
    %82 = vector.shape_cast %81 : vector<4xf32> to vector<1x4xf32>
    %cst_16 = arith.constant 0.000000e+00 : f32
    %83 = vector.shape_cast %74 : vector<4x1xi1> to vector<4x1xi1>
    %84 = vector.broadcast %83 : vector<4x1xi1> to vector<4x4xi1>
    %85 = vector.broadcast %cst_16 : f32 to vector<4x4xf32>
    %86 = arith.select %84, %72, %85 : vector<4x4xi1>, vector<4x4xf32>
    %cst_17 = arith.constant dense<0.000000e+00> : vector<4xf32>
    %87 = vector.multi_reduction <add>, %86, %cst_17 [0] : vector<4x4xf32> to vector<4xf32>
    %88 = vector.shape_cast %87 : vector<4xf32> to vector<1x4xf32>
    %cst_18 = arith.constant 0.000000e+00 : f32
    %89 = vector.broadcast %cst_18 : f32 to vector<1x4xf32>
    %90 = arith.select %76, %82, %89 : vector<1x4xi1>, vector<1x4xf32>
    %cst_19 = arith.constant dense<0.000000e+00> : vector<1xf32>
    %91 = vector.multi_reduction <add>, %90, %cst_19 [1] : vector<1x4xf32> to vector<1xf32>
    %92 = vector.shape_cast %91 : vector<1xf32> to vector<1x1xf32>
    %cst_20 = arith.constant 1.000000e+00 : f32
    %93 = vector.broadcast %cst_20 : f32 to vector<1x1xf32>
    %94 = arith.divf %93, %92 : vector<1x1xf32>
    %95 = vector.broadcast %94 : vector<1x1xf32> to vector<1x4xf32>
    %96 = arith.mulf %82, %95 : vector<1x4xf32>
    %97 = vector.broadcast %94 : vector<1x1xf32> to vector<1x4xf32>
    %98 = arith.mulf %88, %97 : vector<1x4xf32>
    %cst_21 = arith.constant 0.000000e+00 : f32
    %99 = vector.shape_cast %76 : vector<1x4xi1> to vector<1x4xi1>
    %100 = vector.broadcast %99 : vector<1x4xi1> to vector<4x4xi1>
    %101 = vector.broadcast %cst_21 : f32 to vector<4x4xf32>
    %102 = arith.select %100, %63, %101 : vector<4x4xi1>, vector<4x4xf32>
    %cst_22 = arith.constant dense<0.000000e+00> : vector<4xf32>
    %103 = vector.multi_reduction <add>, %102, %cst_22 [1] : vector<4x4xf32> to vector<4xf32>
    %104 = vector.shape_cast %103 : vector<4xf32> to vector<4x1xf32>
    %105 = vector.shape_cast %96 : vector<1x4xf32> to vector<1x4xf32>
    %106 = vector.broadcast %105 : vector<1x4xf32> to vector<4x4xf32>
    %107 = vector.broadcast %104 : vector<4x1xf32> to vector<4x4xf32>
    %108 = vector.broadcast %96 : vector<1x4xf32> to vector<4x4xf32>
    %109 = arith.mulf %107, %108 : vector<4x4xf32>
    %110 = arith.subf %63, %109 : vector<4x4xf32>
    %111 = vector.shape_cast %74 : vector<4x1xi1> to vector<4x1xi1>
    %112 = vector.broadcast %111 : vector<4x1xi1> to vector<4x4xi1>
    %113 = arith.select %112, %106, %110 : vector<4x4xi1>, vector<4x4xf32>
    %114 = vector.shape_cast %98 : vector<1x4xf32> to vector<1x4xf32>
    %115 = vector.broadcast %114 : vector<1x4xf32> to vector<4x4xf32>
    %116 = vector.broadcast %104 : vector<4x1xf32> to vector<4x4xf32>
    %117 = vector.broadcast %98 : vector<1x4xf32> to vector<4x4xf32>
    %118 = arith.mulf %116, %117 : vector<4x4xf32>
    %119 = arith.subf %72, %118 : vector<4x4xf32>
    %120 = vector.shape_cast %74 : vector<4x1xi1> to vector<4x1xi1>
    %121 = vector.broadcast %120 : vector<4x1xi1> to vector<4x4xi1>
    %122 = arith.select %121, %115, %119 : vector<4x4xi1>, vector<4x4xf32>
    %c2_i32 = arith.constant 2 : i32
    %123 = vector.broadcast %c2_i32 : i32 to vector<4x1xi32>
    %124 = arith.cmpi eq, %11, %123 : vector<4x1xi32>
    %125 = vector.broadcast %c2_i32 : i32 to vector<1x4xi32>
    %126 = arith.cmpi eq, %12, %125 : vector<1x4xi32>
    %cst_23 = arith.constant 0.000000e+00 : f32
    %127 = vector.shape_cast %124 : vector<4x1xi1> to vector<4x1xi1>
    %128 = vector.broadcast %127 : vector<4x1xi1> to vector<4x4xi1>
    %129 = vector.broadcast %cst_23 : f32 to vector<4x4xf32>
    %130 = arith.select %128, %113, %129 : vector<4x4xi1>, vector<4x4xf32>
    %cst_24 = arith.constant dense<0.000000e+00> : vector<4xf32>
    %131 = vector.multi_reduction <add>, %130, %cst_24 [0] : vector<4x4xf32> to vector<4xf32>
    %132 = vector.shape_cast %131 : vector<4xf32> to vector<1x4xf32>
    %cst_25 = arith.constant 0.000000e+00 : f32
    %133 = vector.shape_cast %124 : vector<4x1xi1> to vector<4x1xi1>
    %134 = vector.broadcast %133 : vector<4x1xi1> to vector<4x4xi1>
    %135 = vector.broadcast %cst_25 : f32 to vector<4x4xf32>
    %136 = arith.select %134, %122, %135 : vector<4x4xi1>, vector<4x4xf32>
    %cst_26 = arith.constant dense<0.000000e+00> : vector<4xf32>
    %137 = vector.multi_reduction <add>, %136, %cst_26 [0] : vector<4x4xf32> to vector<4xf32>
    %138 = vector.shape_cast %137 : vector<4xf32> to vector<1x4xf32>
    %cst_27 = arith.constant 0.000000e+00 : f32
    %139 = vector.broadcast %cst_27 : f32 to vector<1x4xf32>
    %140 = arith.select %126, %132, %139 : vector<1x4xi1>, vector<1x4xf32>
    %cst_28 = arith.constant dense<0.000000e+00> : vector<1xf32>
    %141 = vector.multi_reduction <add>, %140, %cst_28 [1] : vector<1x4xf32> to vector<1xf32>
    %142 = vector.shape_cast %141 : vector<1xf32> to vector<1x1xf32>
    %cst_29 = arith.constant 1.000000e+00 : f32
    %143 = vector.broadcast %cst_29 : f32 to vector<1x1xf32>
    %144 = arith.divf %143, %142 : vector<1x1xf32>
    %145 = vector.broadcast %144 : vector<1x1xf32> to vector<1x4xf32>
    %146 = arith.mulf %132, %145 : vector<1x4xf32>
    %147 = vector.broadcast %144 : vector<1x1xf32> to vector<1x4xf32>
    %148 = arith.mulf %138, %147 : vector<1x4xf32>
    %cst_30 = arith.constant 0.000000e+00 : f32
    %149 = vector.shape_cast %126 : vector<1x4xi1> to vector<1x4xi1>
    %150 = vector.broadcast %149 : vector<1x4xi1> to vector<4x4xi1>
    %151 = vector.broadcast %cst_30 : f32 to vector<4x4xf32>
    %152 = arith.select %150, %113, %151 : vector<4x4xi1>, vector<4x4xf32>
    %cst_31 = arith.constant dense<0.000000e+00> : vector<4xf32>
    %153 = vector.multi_reduction <add>, %152, %cst_31 [1] : vector<4x4xf32> to vector<4xf32>
    %154 = vector.shape_cast %153 : vector<4xf32> to vector<4x1xf32>
    %155 = vector.shape_cast %146 : vector<1x4xf32> to vector<1x4xf32>
    %156 = vector.broadcast %155 : vector<1x4xf32> to vector<4x4xf32>
    %157 = vector.broadcast %154 : vector<4x1xf32> to vector<4x4xf32>
    %158 = vector.broadcast %146 : vector<1x4xf32> to vector<4x4xf32>
    %159 = arith.mulf %157, %158 : vector<4x4xf32>
    %160 = arith.subf %113, %159 : vector<4x4xf32>
    %161 = vector.shape_cast %124 : vector<4x1xi1> to vector<4x1xi1>
    %162 = vector.broadcast %161 : vector<4x1xi1> to vector<4x4xi1>
    %163 = arith.select %162, %156, %160 : vector<4x4xi1>, vector<4x4xf32>
    %164 = vector.shape_cast %148 : vector<1x4xf32> to vector<1x4xf32>
    %165 = vector.broadcast %164 : vector<1x4xf32> to vector<4x4xf32>
    %166 = vector.broadcast %154 : vector<4x1xf32> to vector<4x4xf32>
    %167 = vector.broadcast %148 : vector<1x4xf32> to vector<4x4xf32>
    %168 = arith.mulf %166, %167 : vector<4x4xf32>
    %169 = arith.subf %122, %168 : vector<4x4xf32>
    %170 = vector.shape_cast %124 : vector<4x1xi1> to vector<4x1xi1>
    %171 = vector.broadcast %170 : vector<4x1xi1> to vector<4x4xi1>
    %172 = arith.select %171, %165, %169 : vector<4x4xi1>, vector<4x4xf32>
    %c3_i32 = arith.constant 3 : i32
    %173 = vector.broadcast %c3_i32 : i32 to vector<4x1xi32>
    %174 = arith.cmpi eq, %11, %173 : vector<4x1xi32>
    %175 = vector.broadcast %c3_i32 : i32 to vector<1x4xi32>
    %176 = arith.cmpi eq, %12, %175 : vector<1x4xi32>
    %cst_32 = arith.constant 0.000000e+00 : f32
    %177 = vector.shape_cast %174 : vector<4x1xi1> to vector<4x1xi1>
    %178 = vector.broadcast %177 : vector<4x1xi1> to vector<4x4xi1>
    %179 = vector.broadcast %cst_32 : f32 to vector<4x4xf32>
    %180 = arith.select %178, %163, %179 : vector<4x4xi1>, vector<4x4xf32>
    %cst_33 = arith.constant dense<0.000000e+00> : vector<4xf32>
    %181 = vector.multi_reduction <add>, %180, %cst_33 [0] : vector<4x4xf32> to vector<4xf32>
    %182 = vector.shape_cast %181 : vector<4xf32> to vector<1x4xf32>
    %cst_34 = arith.constant 0.000000e+00 : f32
    %183 = vector.shape_cast %174 : vector<4x1xi1> to vector<4x1xi1>
    %184 = vector.broadcast %183 : vector<4x1xi1> to vector<4x4xi1>
    %185 = vector.broadcast %cst_34 : f32 to vector<4x4xf32>
    %186 = arith.select %184, %172, %185 : vector<4x4xi1>, vector<4x4xf32>
    %cst_35 = arith.constant dense<0.000000e+00> : vector<4xf32>
    %187 = vector.multi_reduction <add>, %186, %cst_35 [0] : vector<4x4xf32> to vector<4xf32>
    %188 = vector.shape_cast %187 : vector<4xf32> to vector<1x4xf32>
    %cst_36 = arith.constant 0.000000e+00 : f32
    %189 = vector.broadcast %cst_36 : f32 to vector<1x4xf32>
    %190 = arith.select %176, %182, %189 : vector<1x4xi1>, vector<1x4xf32>
    %cst_37 = arith.constant dense<0.000000e+00> : vector<1xf32>
    %191 = vector.multi_reduction <add>, %190, %cst_37 [1] : vector<1x4xf32> to vector<1xf32>
    %192 = vector.shape_cast %191 : vector<1xf32> to vector<1x1xf32>
    %cst_38 = arith.constant 1.000000e+00 : f32
    %193 = vector.broadcast %cst_38 : f32 to vector<1x1xf32>
    %194 = arith.divf %193, %192 : vector<1x1xf32>
    %195 = vector.broadcast %194 : vector<1x1xf32> to vector<1x4xf32>
    %196 = arith.mulf %182, %195 : vector<1x4xf32>
    %197 = vector.broadcast %194 : vector<1x1xf32> to vector<1x4xf32>
    %198 = arith.mulf %188, %197 : vector<1x4xf32>
    %cst_39 = arith.constant 0.000000e+00 : f32
    %199 = vector.shape_cast %176 : vector<1x4xi1> to vector<1x4xi1>
    %200 = vector.broadcast %199 : vector<1x4xi1> to vector<4x4xi1>
    %201 = vector.broadcast %cst_39 : f32 to vector<4x4xf32>
    %202 = arith.select %200, %163, %201 : vector<4x4xi1>, vector<4x4xf32>
    %cst_40 = arith.constant dense<0.000000e+00> : vector<4xf32>
    %203 = vector.multi_reduction <add>, %202, %cst_40 [1] : vector<4x4xf32> to vector<4xf32>
    %204 = vector.shape_cast %203 : vector<4xf32> to vector<4x1xf32>
    %205 = vector.shape_cast %196 : vector<1x4xf32> to vector<1x4xf32>
    %206 = vector.broadcast %205 : vector<1x4xf32> to vector<4x4xf32>
    %207 = vector.broadcast %204 : vector<4x1xf32> to vector<4x4xf32>
    %208 = vector.broadcast %196 : vector<1x4xf32> to vector<4x4xf32>
    %209 = arith.mulf %207, %208 : vector<4x4xf32>
    %210 = arith.subf %163, %209 : vector<4x4xf32>
    %211 = vector.shape_cast %174 : vector<4x1xi1> to vector<4x1xi1>
    %212 = vector.broadcast %211 : vector<4x1xi1> to vector<4x4xi1>
    %213 = arith.select %212, %206, %210 : vector<4x4xi1>, vector<4x4xf32>
    %214 = vector.shape_cast %198 : vector<1x4xf32> to vector<1x4xf32>
    %215 = vector.broadcast %214 : vector<1x4xf32> to vector<4x4xf32>
    %216 = vector.broadcast %204 : vector<4x1xf32> to vector<4x4xf32>
    %217 = vector.broadcast %198 : vector<1x4xf32> to vector<4x4xf32>
    %218 = arith.mulf %216, %217 : vector<4x4xf32>
    %219 = arith.subf %172, %218 : vector<4x4xf32>
    %220 = vector.shape_cast %174 : vector<4x1xi1> to vector<4x1xi1>
    %221 = vector.broadcast %220 : vector<4x1xi1> to vector<4x4xi1>
    %222 = arith.select %221, %215, %219 : vector<4x4xi1>, vector<4x4xf32>
    %c4_i32 = arith.constant 4 : i32
    %cst_41 = arith.constant dense<0.000000e+00> : vector<4x4xf32>
    %223 = tpu.matmul %22, %222, %cst_41 {dimension_numbers = #tpu.dot_dimension_numbers<[1], [0], [0], [1], [0, 0, 1, 1], [], []>} : vector<4x4xf32>, vector<4x4xf32>, vector<4x4xf32> -> vector<4x4xf32>
    %cst_42 = arith.constant 1.000000e+00 : f32
    %224 = vector.broadcast %cst_42 : f32 to vector<4x4xf32>
    %225 = arith.mulf %223, %224 : vector<4x4xf32>
    %c0_43 = arith.constant 0 : index
    %c0_44 = arith.constant 0 : index
    %226 = vector.load %arg2[%c0_43, %c0_44] : memref<4x1xi32, #tpu.memory_space<vmem>>, vector<4x1xi32>
    %cst_45 = arith.constant dense<0xFF800000> : vector<4xf32>
    %227 = vector.multi_reduction <maximumf>, %225, %cst_45 [1] : vector<4x4xf32> to vector<4xf32>
    %228 = vector.shape_cast %227 : vector<4xf32> to vector<4x1xf32>
    %229 = vector.broadcast %228 : vector<4x1xf32> to vector<4x4xf32>
    %230 = arith.subf %225, %229 : vector<4x4xf32>
    %231 = math.exp %230 : vector<4x4xf32>
    %cst_46 = arith.constant dense<0.000000e+00> : vector<4xf32>
    %232 = vector.multi_reduction <add>, %231, %cst_46 [1] : vector<4x4xf32> to vector<4xf32>
    %233 = vector.shape_cast %232 : vector<4xf32> to vector<4x1xf32>
    %234 = math.log %233 : vector<4x1xf32>
    %235 = arith.addf %234, %228 : vector<4x1xf32>
    %236 = vector.broadcast %12 : vector<1x4xi32> to vector<4x4xi32>
    %237 = vector.broadcast %11 : vector<4x1xi32> to vector<4x4xi32>
    %238 = arith.cmpi eq, %236, %237 : vector<4x4xi32>
    %cst_47 = arith.constant 0.000000e+00 : f32
    %239 = vector.broadcast %cst_47 : f32 to vector<4x4xf32>
    %240 = arith.select %238, %225, %239 : vector<4x4xi1>, vector<4x4xf32>
    %cst_48 = arith.constant dense<0.000000e+00> : vector<4xf32>
    %241 = vector.multi_reduction <add>, %240, %cst_48 [1] : vector<4x4xf32> to vector<4xf32>
    %242 = vector.shape_cast %241 : vector<4xf32> to vector<4x1xf32>
    %243 = vector.broadcast %12 : vector<1x4xi32> to vector<4x4xi32>
    %244 = vector.broadcast %226 : vector<4x1xi32> to vector<4x4xi32>
    %245 = arith.cmpi eq, %243, %244 : vector<4x4xi32>
    %cst_49 = arith.constant 0.000000e+00 : f32
    %246 = vector.broadcast %cst_49 : f32 to vector<4x4xf32>
    %247 = arith.select %245, %225, %246 : vector<4x4xi1>, vector<4x4xf32>
    %cst_50 = arith.constant dense<0.000000e+00> : vector<4xf32>
    %248 = vector.multi_reduction <add>, %247, %cst_50 [1] : vector<4x4xf32> to vector<4xf32>
    %249 = vector.shape_cast %248 : vector<4xf32> to vector<4x1xf32>
    %c0_51 = arith.constant 0 : index
    %250 = memref.load %arg3[%c0_51] : memref<1xf32, #tpu.memory_space<smem>>
    %251 = arith.subf %235, %242 : vector<4x1xf32>
    %252 = vector.broadcast %250 : f32 to vector<4x1xf32>
    %253 = arith.mulf %252, %251 : vector<4x1xf32>
    %cst_52 = arith.constant 1.000000e+00 : f32
    %254 = arith.subf %cst_52, %250 : f32
    %255 = arith.subf %235, %249 : vector<4x1xf32>
    %256 = vector.broadcast %254 : f32 to vector<4x1xf32>
    %257 = arith.mulf %256, %255 : vector<4x1xf32>
    %258 = arith.addf %253, %257 : vector<4x1xf32>
    %259 = vector.broadcast %228 : vector<4x1xf32> to vector<4x4xf32>
    %260 = arith.cmpf oeq, %225, %259 : vector<4x4xf32>
    %c4_i32_53 = arith.constant 4 : i32
    %261 = vector.shape_cast %12 : vector<1x4xi32> to vector<1x4xi32>
    %262 = vector.broadcast %261 : vector<1x4xi32> to vector<4x4xi32>
    %263 = vector.broadcast %c4_i32_53 : i32 to vector<4x4xi32>
    %264 = arith.select %260, %262, %263 : vector<4x4xi1>, vector<4x4xi32>
    %cst_54 = arith.constant dense<2147483647> : vector<4xi32>
    %265 = vector.multi_reduction <minsi>, %264, %cst_54 [1] : vector<4x4xi32> to vector<4xi32>
    %266 = vector.shape_cast %265 : vector<4xi32> to vector<4x1xi32>
    %267 = arith.cmpi eq, %266, %11 : vector<4x1xi32>
    %268 = arith.extui %267 : vector<4x1xi1> to vector<4x1xi32>
    %269 = arith.sitofp %268 : vector<4x1xi32> to vector<4x1xf32>
    %270 = vector.broadcast %250 : f32 to vector<4x1xf32>
    %271 = arith.mulf %270, %269 : vector<4x1xf32>
    %cst_55 = arith.constant 1.000000e+00 : f32
    %272 = arith.subf %cst_55, %250 : f32
    %273 = arith.cmpi eq, %266, %226 : vector<4x1xi32>
    %274 = arith.extui %273 : vector<4x1xi1> to vector<4x1xi32>
    %275 = arith.sitofp %274 : vector<4x1xi32> to vector<4x1xf32>
    %276 = vector.broadcast %272 : f32 to vector<4x1xf32>
    %277 = arith.mulf %276, %275 : vector<4x1xf32>
    %278 = arith.addf %271, %277 : vector<4x1xf32>
    %279 = vector.shape_cast %258 : vector<4x1xf32> to vector<1x4x1xf32>
    %cst_56 = arith.constant dense<0.000000e+00> : vector<1xf32>
    %280 = vector.multi_reduction <add>, %279, %cst_56 [1, 2] : vector<1x4x1xf32> to vector<1xf32>
    %281 = vector.shape_cast %280 : vector<1xf32> to vector<1x1x1xf32>
    %282 = vector.extract %281[0, 0, 0] : f32 from vector<1x1x1xf32>
    %cst_57 = arith.constant 2.500000e-01 : f32
    %283 = arith.mulf %282, %cst_57 : f32
    %c0_58 = arith.constant 0 : index
    %284 = memref.load %arg4[%c0_58] : memref<1xf32, #tpu.memory_space<smem>>
    memref.store %283, %arg4[%c0_58] : memref<1xf32, #tpu.memory_space<smem>>
    %285 = vector.shape_cast %278 : vector<4x1xf32> to vector<1x4x1xf32>
    %cst_59 = arith.constant dense<0.000000e+00> : vector<1xf32>
    %286 = vector.multi_reduction <add>, %285, %cst_59 [1, 2] : vector<1x4x1xf32> to vector<1xf32>
    %287 = vector.shape_cast %286 : vector<1xf32> to vector<1x1x1xf32>
    %288 = vector.extract %287[0, 0, 0] : f32 from vector<1x1x1xf32>
    %cst_60 = arith.constant 2.500000e-01 : f32
    %289 = arith.mulf %288, %cst_60 : f32
    %c0_61 = arith.constant 0 : index
    %290 = memref.load %arg5[%c0_61] : memref<1xf32, #tpu.memory_space<smem>>
    memref.store %289, %arg5[%c0_61] : memref<1xf32, #tpu.memory_space<smem>>
    return
  }
  func.func @transform_0(%arg0: i32) -> (i32, i32) {
    %c0_i32 = arith.constant 0 : i32
    %c0_i32_0 = arith.constant 0 : i32
    %c0_i32_1 = arith.constant 0 : i32
    return %c0_i32, %c0_i32_0 : i32, i32
  }
  func.func @transform_1(%arg0: i32) -> (i32, i32) {
    %c0_i32 = arith.constant 0 : i32
    %c0_i32_0 = arith.constant 0 : i32
    %c0_i32_1 = arith.constant 0 : i32
    return %c0_i32, %c0_i32_0 : i32, i32
  }
  func.func @transform_2(%arg0: i32) -> i32 {
    %c0_i32 = arith.constant 0 : i32
    %c0_i32_0 = arith.constant 0 : i32
    return %c0_i32 : i32
  }
  func.func @transform_3(%arg0: i32) -> i32 {
    %c0_i32 = arith.constant 0 : i32
    %c0_i32_0 = arith.constant 0 : i32
    return %c0_i32 : i32
  }
  func.func @transform_4(%arg0: i32) -> i32 {
    %c0_i32 = arith.constant 0 : i32
    %c0_i32_0 = arith.constant 0 : i32
    return %c0_i32 : i32
  }
}

</mosaic_0001>

<llo_original>
// kernel: tpu_custom_call.1
$region0: #{tpu_custom_call.1}
  #allocation0 [shape = 'u32[]', space=smem, size = 0x4, offset = 0x4, fixed_abs, tag = 'smem constant byte address 0x4 - core index']
  #allocation1 [shape = 'u32[72,128]{1,0:T(1,128)}', space=vmem, size = 0x9000, scoped, tag = 'internal scratch']
  #allocation2 [shape = 'f32[1]{0:T(128)S(6)}', space=smem, size = 0x200, scoped, tag = 'scoped memory for tpu_custom_call.1']
  %s0 = inlined_call_operand.hbm [shape: f32[8,32], index: 0, kind: input, shape index: {}]
  %s1 = inlined_call_operand.vmem [shape: s32[4,1], index: 1, kind: input, shape index: {}]
  %s2 = inlined_call_operand.<no memory space> [shape: f32[1], index: 2, kind: input, shape index: {}]
  %s3 = inlined_call_operand.hbm [shape: f32[1], index: 3, kind: output, shape index: {0}]
  %s4 = inlined_call_operand.hbm [shape: f32[1], index: 4, kind: output, shape index: {1}]
  %5 = xla_tuple %s3, %s4
  %s6 = sld [smem:[#allocation0]]
  $region34: #{tpu_custom_call.1} parent=0
    _
  %s8 = ssub.s32 1, %s6
  %s9 = scalar_select 0, %s8, %s6
  %10 = sst [smem:[#allocation2]] %s2
  $region1: #{tpu_custom_call.1} parent=0
    #allocation3 [shape = 'u8[4096]{0}', space=vmem, size = 0x1000, scoped, tag = 'input window, operand 0, single buffered']
    #allocation4 [shape = 's32[1]{0}', space=sflag, size = 0x4, scoped, tag = 'scoped memory for tpu_custom_call.1']
    #allocation5 [shape = 's32[1]{0}', space=sflag, size = 0x4, scoped, tag = 'scoped memory for tpu_custom_call.1']
    #allocation6 [shape = 'u8[512]{0}', space=smem, size = 0x200, scoped, tag = 'output window, operand 0, single buffered']
    #allocation7 [shape = 'u8[512]{0}', space=smem, size = 0x200, scoped, tag = 'output window, operand 1, single buffered']
    #allocation8 [shape = 's32[1]{0}', space=sflag, size = 0x4, scoped, tag = 'scoped memory for tpu_custom_call.1']
    %11 = vsyncpa [#allocation4], 0
    %12 = vsyncpa [#allocation5], 0
    %13 = vsyncpa [#allocation8], 0
    // Predicated region
    $region2: #{tpu_custom_call.1} parent=1 // pred_check
      _
    $region3: #{tpu_custom_call.1} parent=1 // pred_check_branch
      %15 = sbr.rel (0) target = $region5
    $region4: #{tpu_custom_call.1} parent=1 // pred_region
      %17 = vsyncadd [#allocation4], 0
      %s19 = sshll.u32 %s0, 4
      %s20 = int_to_ptr.hbm [resolvable:$true] %s19
      %s21 = sshll.u32 [#allocation3], 4
      %s22 = int_to_ptr.vmem [resolvable:$true] %s21
      %24 = dma.hbm_to_vmem [thread:$0]  %s20, 128, %s22, [#allocation4]
    $region5: #{tpu_custom_call.1} parent=1 // pred_fallthru
      _
    // Predicated region
    $region6: #{tpu_custom_call.1} parent=1 // pred_check
      _
    $region7: #{tpu_custom_call.1} parent=1 // pred_check_branch
      %26 = sbr.rel (0) target = $region9
    $region8: #{tpu_custom_call.1} parent=1 // pred_region
      _
    $region9: #{tpu_custom_call.1} parent=1 // pred_fallthru
      _
    // Predicated region
    $region10: #{tpu_custom_call.1} parent=1 // pred_check
      _
    $region11: #{tpu_custom_call.1} parent=1 // pred_check_branch
      %28 = sbr.rel (0) target = $region13
    $region12: #{tpu_custom_call.1} parent=1 // pred_region
      _
    $region13: #{tpu_custom_call.1} parent=1 // pred_fallthru
      _
    // Predicated region
    $region14: #{tpu_custom_call.1} parent=1 // pred_check
      _
    $region15: #{tpu_custom_call.1} parent=1 // pred_check_branch
      %30 = sbr.rel (0) target = $region17
    $region16: #{tpu_custom_call.1} parent=1 // pred_region
      %32 = dma.done [#allocation4], 128
    $region17: #{tpu_custom_call.1} parent=1 // pred_fallthru
      _
    %v33 = vld [vmem:[#allocation3] sm:$0xff]
    %v34 = vmul.f32 %v33, %v33
    %vm35 = vcmask 261120
    %v36 = vsel %vm35, %v34, 0.0
    %37 = vadd.xlane.f32.xlu0 %v36
    %v38 = vpop.xlane.xlu0 %37
    %v39 = vmax.f32 %v38, 1e-24
    %v40 = vrsqrt.pop %v39
    %v41 = vmul.f32 %v40, %v39
    %v42 = vmul.f32 %v41, %v40
    %v43 = vmul.f32 0.5, %v42
    %v44 = vsub.f32 1.5, %v43
    %v45 = vmul.f32 %v40, %v44
    %vm46 = vweird.f32 %v39
    %vm47 = vweird.f32 %v40
    %vm48 = vmor %vm46, %vm47
    %v49 = vsel %vm48, %v40, %v45
    %v50 = vmul.f32 %v33, %v49
    %v51 = vlaneseq
    %v52 = vshrl.u32 %v51, 7
    %v53 = vlaneseq
    %v54 = vand.u32 %v53, 127
    %vm55 = vcmp.eq.s32.totalorder %v52, %v54
    %v56 = vsel %vm55, 1, 0
    %v57 = vcvt.s32.f32 %v56
    %v58 = vmul.f32 %v57, 50.0
    %v60 = vsel %vm35, %v50, 0
    %62 = vmatpush.xpose.msra.mxu0 0.0
    %63 = vmatpush.xpose.msra.mxu0 0.0
    %64 = vmatpush.xpose.msra.mxu0 0.0
    %65 = vmatpush.xpose.msra.mxu0 0.0
    %66 = vmatpush.xpose.msra.mxu0 0.0
    %67 = vmatpush.xpose.msra.mxu0 0.0
    %68 = vmatpush.xpose.msra.mxu0 0.0
    %69 = vmatpush.xpose.msra.mxu0 0.0
    %70 = vmatpush.xpose.msra.mxu0 0.0
    %71 = vmatpush.xpose.msra.mxu0 0.0
    %72 = vmatpush.xpose.msra.mxu0 0.0
    %73 = vmatpush.xpose.msra.mxu0 0.0
    %74 = vmatpush.xpose.msra.mxu0 0.0
    %75 = vmatpush.xpose.msra.mxu0 0.0
    %76 = vmatpush.xpose.msra.mxu0 0.0
    %77 = vmatpush.xpose.msra.mxu0 %v60
    %78 = vmatmul.f32.gmra.mxu0 %v60
    %v79 = vpop.f32.mrf.mxu0
    %v80 = vadd.f32 %v58, %v79
    %81 = vdwg.mxu0
    %v82 = vrot.slane %v50, 4
    %v83 = vsel %vm35, %v82, 0
    %85 = vmatpush.xpose.msra.mxu0 0.0
    %86 = vmatpush.xpose.msra.mxu0 0.0
    %87 = vmatpush.xpose.msra.mxu0 0.0
    %88 = vmatpush.xpose.msra.mxu0 0.0
    %89 = vmatpush.xpose.msra.mxu0 0.0
    %90 = vmatpush.xpose.msra.mxu0 0.0
    %91 = vmatpush.xpose.msra.mxu0 0.0
    %92 = vmatpush.xpose.msra.mxu0 0.0
    %93 = vmatpush.xpose.msra.mxu0 0.0
    %94 = vmatpush.xpose.msra.mxu0 0.0
    %95 = vmatpush.xpose.msra.mxu0 0.0
    %96 = vmatpush.xpose.msra.mxu0 0.0
    %97 = vmatpush.xpose.msra.mxu0 0.0
    %98 = vmatpush.xpose.msra.mxu0 0.0
    %99 = vmatpush.xpose.msra.mxu0 0.0
    %100 = vmatpush.xpose.msra.mxu0 %v60
    %101 = vmatmul.f32.gmra.mxu0 %v83
    %v102 = vpop.f32.mrf.mxu0
    %v103 = vadd.f32 0.0, %v102
    %104 = vdwg.mxu0
    %vm105 = vcmp.eq.s32.totalorder %v52, 0
    %vm106 = vcmp.eq.s32.totalorder %v54, 0
    %v107 = vsel %vm105, 1, 0
    %vm108 = vcmp.eq.s32.totalorder %v107, 1
    %v109 = vsel %vm108, %v80, 0.0
    %vm110 = vcmask 27648
    %v111 = vsel %vm110, %v109, 0.0
    %v112 = vrot.slane %v111, 4
    %v113 = vadd.f32 %v111, %v112
    %v114 = vrot.slane %v113, 2
    %v115 = vadd.f32 %v113, %v114
    %v116 = vrot.slane %v115, 1
    %v117 = vadd.f32 %v115, %v116
    %v118 = vsel %vm108, %v57, 0.0
    %v119 = vsel %vm110, %v118, 0.0
    %v120 = vrot.slane %v119, 4
    %v121 = vadd.f32 %v119, %v120
    %v122 = vrot.slane %v121, 2
    %v123 = vadd.f32 %v121, %v122
    %v124 = vrot.slane %v123, 1
    %v125 = vadd.f32 %v123, %v124
    %v126 = vsel %vm106, %v117, 0.0
    %vm127 = vcmask 31744
    %v128 = vsel %vm127, %v126, 0.0
    %129 = vadd.xlane.f32.xlu0 %v128
    %v130 = vpop.xlane.xlu0 %129
    %v131 = vrcp.pop %v130
    %v132 = vmul.f32 %v130, %v131
    %v133 = vsub.f32 1.0, %v132
    %v134 = vmul.f32 %v131, %v133
    %v135 = vadd.f32 %v131, %v134
    %vm136 = vweird.f32 %v130
    %vm137 = vweird.f32 %v131
    %vm138 = vmor %vm136, %vm137
    %v139 = vsel %vm138, %v131, %v135
    %v140 = vand.u32 2147483647, %v130
    %vm141 = vcmp.eq.f32.partialorder %v140, 8.507059e+37
    %v142 = vand.u32 %v130, 2147483648
    %v143 = vor.u32 1.1754944e-38, %v142
    %v144 = vsel %vm141, %v143, %v139
    %v145 = vmul.f32 1.0, %v144
    %v146 = vmul.f32 %v117, %v145
    %v147 = vmul.f32 %v125, %v145
    %v148 = vsel %vm106, 1, 0
    %vm149 = vcmp.eq.s32.totalorder %v148, 1
    %v150 = vsel %vm149, %v80, 0.0
    %v151 = vsel %vm110, %v150, 0.0
    %152 = vadd.xlane.f32.xlu0 %v151
    %v153 = vpop.xlane.xlu0 %152
    %v154 = vmul.f32 %v153, %v146
    %v155 = vsub.f32 %v80, %v154
    %v156 = vsel %vm108, %v146, %v155
    %v157 = vmul.f32 %v153, %v147
    %v158 = vsub.f32 %v57, %v157
    %v159 = vsel %vm108, %v147, %v158
    %vm160 = vcmp.eq.s32.totalorder %v52, 1
    %vm161 = vcmp.eq.s32.totalorder %v54, 1
    %v162 = vsel %vm160, 1, 0
    %vm163 = vcmp.eq.s32.totalorder %v162, 1
    %v164 = vsel %vm163, %v156, 0.0
    %v165 = vsel %vm110, %v164, 0.0
    %v166 = vrot.slane %v165, 4
    %v167 = vadd.f32 %v165, %v166
    %v168 = vrot.slane %v167, 2
    %v169 = vadd.f32 %v167, %v168
    %v170 = vrot.slane %v169, 1
    %v171 = vadd.f32 %v169, %v170
    %v172 = vsel %vm163, %v159, 0.0
    %v173 = vsel %vm110, %v172, 0.0
    %v174 = vrot.slane %v173, 4
    %v175 = vadd.f32 %v173, %v174
    %v176 = vrot.slane %v175, 2
    %v177 = vadd.f32 %v175, %v176
    %v178 = vrot.slane %v177, 1
    %v179 = vadd.f32 %v177, %v178
    %v180 = vsel %vm161, %v171, 0.0
    %v181 = vsel %vm127, %v180, 0.0
    %182 = vadd.xlane.f32.xlu0 %v181
    %v183 = vpop.xlane.xlu0 %182
    %v184 = vrcp.pop %v183
    %v185 = vmul.f32 %v183, %v184
    %v186 = vsub.f32 1.0, %v185
    %v187 = vmul.f32 %v184, %v186
    %v188 = vadd.f32 %v184, %v187
    %vm189 = vweird.f32 %v183
    %vm190 = vweird.f32 %v184
    %vm191 = vmor %vm189, %vm190
    %v192 = vsel %vm191, %v184, %v188
    %v193 = vand.u32 2147483647, %v183
    %vm194 = vcmp.eq.f32.partialorder %v193, 8.507059e+37
    %v195 = vand.u32 %v183, 2147483648
    %v196 = vor.u32 1.1754944e-38, %v195
    %v197 = vsel %vm194, %v196, %v192
    %v198 = vmul.f32 1.0, %v197
    %v199 = vmul.f32 %v171, %v198
    %v200 = vmul.f32 %v179, %v198
    %v201 = vsel %vm161, 1, 0
    %vm202 = vcmp.eq.s32.totalorder %v201, 1
    %v203 = vsel %vm202, %v156, 0.0
    %v204 = vsel %vm110, %v203, 0.0
    %205 = vadd.xlane.f32.xlu0 %v204
    %v206 = vpop.xlane.xlu0 %205
    %v207 = vmul.f32 %v206, %v199
    %v208 = vsub.f32 %v156, %v207
    %v209 = vsel %vm163, %v199, %v208
    %v210 = vmul.f32 %v206, %v200
    %v211 = vsub.f32 %v159, %v210
    %v212 = vsel %vm163, %v200, %v211
    %vm213 = vcmp.eq.s32.totalorder %v52, 2
    %vm214 = vcmp.eq.s32.totalorder %v54, 2
    %v215 = vsel %vm213, 1, 0
    %vm216 = vcmp.eq.s32.totalorder %v215, 1
    %v217 = vsel %vm216, %v209, 0.0
    %v218 = vsel %vm110, %v217, 0.0
    %v219 = vrot.slane %v218, 4
    %v220 = vadd.f32 %v218, %v219
    %v221 = vrot.slane %v220, 2
    %v222 = vadd.f32 %v220, %v221
    %v223 = vrot.slane %v222, 1
    %v224 = vadd.f32 %v222, %v223
    %v225 = vsel %vm216, %v212, 0.0
    %v226 = vsel %vm110, %v225, 0.0
    %v227 = vrot.slane %v226, 4
    %v228 = vadd.f32 %v226, %v227
    %v229 = vrot.slane %v228, 2
    %v230 = vadd.f32 %v228, %v229
    %v231 = vrot.slane %v230, 1
    %v232 = vadd.f32 %v230, %v231
    %v233 = vsel %vm214, %v224, 0.0
    %v234 = vsel %vm127, %v233, 0.0
    %235 = vadd.xlane.f32.xlu0 %v234
    %v236 = vpop.xlane.xlu0 %235
    %v237 = vrcp.pop %v236
    %v238 = vmul.f32 %v236, %v237
    %v239 = vsub.f32 1.0, %v238
    %v240 = vmul.f32 %v237, %v239
    %v241 = vadd.f32 %v237, %v240
    %vm242 = vweird.f32 %v236
    %vm243 = vweird.f32 %v237
    %vm244 = vmor %vm242, %vm243
    %v245 = vsel %vm244, %v237, %v241
    %v246 = vand.u32 2147483647, %v236
    %vm247 = vcmp.eq.f32.partialorder %v246, 8.507059e+37
    %v248 = vand.u32 %v236, 2147483648
    %v249 = vor.u32 1.1754944e-38, %v248
    %v250 = vsel %vm247, %v249, %v245
    %v251 = vmul.f32 1.0, %v250
    %v252 = vmul.f32 %v224, %v251
    %v253 = vmul.f32 %v232, %v251
    %v254 = vsel %vm214, 1, 0
    %vm255 = vcmp.eq.s32.totalorder %v254, 1
    %v256 = vsel %vm255, %v209, 0.0
    %v257 = vsel %vm110, %v256, 0.0
    %258 = vadd.xlane.f32.xlu0 %v257
    %v259 = vpop.xlane.xlu0 %258
    %v260 = vmul.f32 %v259, %v252
    %v261 = vsub.f32 %v209, %v260
    %v262 = vsel %vm216, %v252, %v261
    %v263 = vmul.f32 %v259, %v253
    %v264 = vsub.f32 %v212, %v263
    %v265 = vsel %vm216, %v253, %v264
    %vm266 = vcmp.eq.s32.totalorder %v52, 3
    %vm267 = vcmp.eq.s32.totalorder %v54, 3
    %v268 = vsel %vm266, 1, 0
    %vm269 = vcmp.eq.s32.totalorder %v268, 1
    %v270 = vsel %vm269, %v262, 0.0
    %v271 = vsel %vm110, %v270, 0.0
    %v272 = vrot.slane %v271, 4
    %v273 = vadd.f32 %v271, %v272
    %v274 = vrot.slane %v273, 2
    %v275 = vadd.f32 %v273, %v274
    %v276 = vrot.slane %v275, 1
    %v277 = vadd.f32 %v275, %v276
    %v278 = vsel %vm269, %v265, 0.0
    %v279 = vsel %vm110, %v278, 0.0
    %v280 = vrot.slane %v279, 4
    %v281 = vadd.f32 %v279, %v280
    %v282 = vrot.slane %v281, 2
    %v283 = vadd.f32 %v281, %v282
    %v284 = vrot.slane %v283, 1
    %v285 = vadd.f32 %v283, %v284
    %v286 = vsel %vm267, %v277, 0.0
    %v287 = vsel %vm127, %v286, 0.0
    %288 = vadd.xlane.f32.xlu0 %v287
    %v289 = vpop.xlane.xlu0 %288
    %v290 = vrcp.pop %v289
    %v291 = vmul.f32 %v289, %v290
    %v292 = vsub.f32 1.0, %v291
    %v293 = vmul.f32 %v290, %v292
    %v294 = vadd.f32 %v290, %v293
    %vm295 = vweird.f32 %v289
    %vm296 = vweird.f32 %v290
    %vm297 = vmor %vm295, %vm296
    %v298 = vsel %vm297, %v290, %v294
    %v299 = vand.u32 2147483647, %v289
    %vm300 = vcmp.eq.f32.partialorder %v299, 8.507059e+37
    %v301 = vand.u32 %v289, 2147483648
    %v302 = vor.u32 1.1754944e-38, %v301
    %v303 = vsel %vm300, %v302, %v298
    %v304 = vmul.f32 1.0, %v303
    %v305 = vmul.f32 %v285, %v304
    %v306 = vsel %vm267, 1, 0
    %vm307 = vcmp.eq.s32.totalorder %v306, 1
    %v308 = vsel %vm307, %v262, 0.0
    %v309 = vsel %vm110, %v308, 0.0
    %310 = vadd.xlane.f32.xlu0 %v309
    %v311 = vpop.xlane.xlu0 %310
    %v312 = vmul.f32 %v311, %v305
    %v313 = vsub.f32 %v265, %v312
    %v314 = vsel %vm269, %v305, %v313
    %v316 = vsel %vm127, %v103, 0
    %vm318 = vcmask 1043456
    %v320 = vsel %vm318, %v314, 0
    %322 = vmatpush.msra.mxu0 0.0
    %323 = vmatpush.msra.mxu0 0.0
    %324 = vmatpush.msra.mxu0 0.0
    %325 = vmatpush.msra.mxu0 0.0
    %326 = vmatpush.msra.mxu0 0.0
    %327 = vmatpush.msra.mxu0 0.0
    %328 = vmatpush.msra.mxu0 0.0
    %329 = vmatpush.msra.mxu0 0.0
    %330 = vmatpush.msra.mxu0 0.0
    %331 = vmatpush.msra.mxu0 0.0
    %332 = vmatpush.msra.mxu0 0.0
    %333 = vmatpush.msra.mxu0 0.0
    %334 = vmatpush.msra.mxu0 0.0
    %335 = vmatpush.msra.mxu0 0.0
    %336 = vmatpush.msra.mxu0 0.0
    %337 = vmatpush.msra.mxu0 %v320
    %338 = vmatmul.f32.gmra.mxu0 %v316
    %v339 = vpop.f32.mrf.mxu0
    %v340 = vadd.f32 0.0, %v339
    %341 = vdwg.mxu0
    %v342 = vld [vmem:[%s1] sm:$0xf]
    %v343 = vsel %vm110, %v340, -inf
    %344 = vmax.xlane.f32.xlu0 %v343
    %v345 = vpop.xlane.xlu0 %344
    %v346 = vsub.f32 %v340, %v345
    %v347 = vmul.f32 %v346, 1.442695
    %v348 = vpow.pop %v347
    %v349 = vsel %vm110, %v348, 0.0
    %350 = vadd.xlane.f32.xlu0 %v349
    %v351 = vpop.xlane.xlu0 %350
    %v352 = vlog2.pop %v351
    %v353 = vmul.f32 %v352, 0.6931472
    %v354 = vadd.f32 %v353, %v345
    %vm355 = vcmp.eq.s32.totalorder %v54, %v52
    %v356 = vsel %vm355, %v340, 0.0
    %v357 = vsel %vm110, %v356, 0.0
    %358 = vadd.xlane.f32.xlu0 %v357
    %v359 = vpop.xlane.xlu0 %358
    %360 = vset.pattern.permute.xlu0 0
    %361 = vperm.xlu0 %360, %v342
    %v362 = vpop.permute.xlu0 %361
    %vm363 = vcmp.eq.s32.totalorder %v54, %v362
    %v364 = vsel %vm363, %v340, 0.0
    %v365 = vsel %vm110, %v364, 0.0
    %366 = vadd.xlane.f32.xlu0 %v365
    %v367 = vpop.xlane.xlu0 %366
    %s368 = sld [smem:[#allocation2]]
    %v369 = vsub.f32 %v354, %v359
    %v370 = vstv %s368
    %v371 = vmul.f32 %v370, %v369
    %s372 = ssub.f32 1.0, %s368
    %v373 = vsub.f32 %v354, %v367
    %v374 = vstv %s372
    %v375 = vmul.f32 %v374, %v373
    %v376 = vadd.f32 %v371, %v375
    %vm377 = vcmp.eq.f32.partialorder %v340, %v345
    %v378 = vsel %vm377, %v54, 4
    %v379 = vsel %vm110, %v378, 2147483647
    %v380 = vand.u32 %v379, 65535
    %v381 = vshra.s32 %v379, 16
    %v382 = vcvt.s32.f32 %v380
    %v383 = vcvt.s32.f32 %v381
    %384 = vmin.xlane.f32.xlu0 %v383
    %v385 = vpop.xlane.xlu0 %384
    %vm386 = vcmp.eq.f32.partialorder %v383, %v385
    %v387 = vsel %vm386, %v382, inf
    %388 = vmin.xlane.f32.xlu0 %v387
    %v389 = vpop.xlane.xlu0 %388
    %v390 = vcvt.f32.s32 %v389
    %v391 = vcvt.f32.s32 %v385
    %v392 = vshll.u32 %v391, 16
    %v393 = vadd.s32 %v392, %v390
    %vm394 = vcmp.eq.s32.totalorder %v393, %v52
    %v395 = vsel %vm394, 1, 0
    %v396 = vcvt.s32.f32 %v395
    %v397 = vmul.f32 %v370, %v396
    %vm398 = vcmp.eq.s32.totalorder %v393, %v342
    %v399 = vsel %vm398, 1, 0
    %v400 = vcvt.s32.f32 %v399
    %v401 = vmul.f32 %v374, %v400
    %v402 = vadd.f32 %v397, %v401
    %vm403 = vcmask 3072
    %v404 = vsel %vm403, %v376, 0.0
    %405 = vadd.xlane.f32.xlu0 %v404
    %v406 = vpop.xlane.xlu0 %405
    %v407 = vrot.slane %v406, 4
    %v408 = vadd.f32 %v406, %v407
    %v409 = vrot.slane %v408, 2
    %v410 = vadd.f32 %v408, %v409
    %v411 = vrot.slane %v410, 1
    %v412 = vadd.f32 %v410, %v411
    %s413 = vtos %v412
    %s414 = smul.f32 %s413, 0.25
    %s415 = scalar_lea.smem [#allocation6], 0
    %416 = sst [smem:[%s415]] %s414
    %v417 = vsel %vm403, %v402, 0.0
    %418 = vadd.xlane.f32.xlu0 %v417
    %v419 = vpop.xlane.xlu0 %418
    %v420 = vrot.slane %v419, 4
    %v421 = vadd.f32 %v419, %v420
    %v422 = vrot.slane %v421, 2
    %v423 = vadd.f32 %v421, %v422
    %v424 = vrot.slane %v423, 1
    %v425 = vadd.f32 %v423, %v424
    %s426 = vtos %v425
    %s427 = smul.f32 %s426, 0.25
    %s428 = scalar_lea.smem [#allocation7], 0
    %429 = sst [smem:[%s428]] %s427
    // Predicated region
    $region18: #{tpu_custom_call.1} parent=1 // pred_check
      _
    $region19: #{tpu_custom_call.1} parent=1 // pred_check_branch
      %431 = sbr.rel (0) target = $region21
    $region20: #{tpu_custom_call.1} parent=1 // pred_region
      %433 = vsyncadd [#allocation5], 0
      %s435 = sshll.u32 %s3, 4
      %s436 = int_to_ptr.hbm [resolvable:$true] %s435
      %438 = dma.smem_to_hbm [#allocation6], 16, %s436, [#allocation5]
    $region21: #{tpu_custom_call.1} parent=1 // pred_fallthru
      _
    // Predicated region
    $region22: #{tpu_custom_call.1} parent=1 // pred_check
      _
    $region23: #{tpu_custom_call.1} parent=1 // pred_check_branch
      %440 = sbr.rel (0) target = $region25
    $region24: #{tpu_custom_call.1} parent=1 // pred_region
      %442 = vsyncadd [#allocation8], 0
      %s444 = sshll.u32 %s4, 4
      %s445 = int_to_ptr.hbm [resolvable:$true] %s444
      %447 = dma.smem_to_hbm [#allocation7], 16, %s445, [#allocation8]
    $region25: #{tpu_custom_call.1} parent=1 // pred_fallthru
      _
    // Predicated region
    $region26: #{tpu_custom_call.1} parent=1 // pred_check
      _
    $region27: #{tpu_custom_call.1} parent=1 // pred_check_branch
      %449 = sbr.rel (0) target = $region29
    $region28: #{tpu_custom_call.1} parent=1 // pred_region
      %451 = dma.done [#allocation5], 16
    $region29: #{tpu_custom_call.1} parent=1 // pred_fallthru
      _
    // Predicated region
    $region30: #{tpu_custom_call.1} parent=1 // pred_check
      _
    $region31: #{tpu_custom_call.1} parent=1 // pred_check_branch
      %453 = sbr.rel (0) target = $region33
    $region32: #{tpu_custom_call.1} parent=1 // pred_region
      %455 = dma.done [#allocation8], 16
    $region33: #{tpu_custom_call.1} parent=1 // pred_fallthru
      _
    %456 = sfence
    %457 = vsyncpa [#allocation4], 1
    %458 = vsyncpa [#allocation5], 1
    %459 = vsyncpa [#allocation8], 1

</llo_original>
